<compile_context>
chip_gen: v7x
topology: tpu7x:2x2x1
jax: 0.10.0
libtpu: 0.0.40
codegen_flags: <defaults>
</compile_context>

<pallas_src>
import functools

import jax
import jax.numpy as jnp
from jax.experimental import pallas as pl
from jax.experimental.pallas import tpu as pltpu

LN_EPS = 1e-12  # matches LayerNorm(args.visual_size, eps=1e-12) in the module


def _round_up(a, b):
    return -(-a // b) * b


def _tpu_info():
    """Return (device_kind lowercased, physical VMEM bytes), defensively."""
    kind = ""
    try:
        kind = jax.devices()[0].device_kind.lower()
    except Exception:
        pass
    vmem_cap = None
    try:
        vmem_cap = int(pltpu.get_tpu_info().vmem_capacity_bytes)
    except Exception:
        vmem_cap = None
    if vmem_cap is None or vmem_cap <= 0:
        if ("v5" in kind) or ("v6" in kind):
            vmem_cap = 128 << 20        # v5e / v6e: 128 MiB per TensorCore
        else:
            vmem_cap = 64 << 20         # v7x (and unknown): be conservative
    return kind, vmem_cap


# ----------------------------- VMEM estimates ------------------------------

def _vmem_simple(tm, v, h2, h):
    """Working-set estimate (bytes) for the fully-fused single-axis kernel."""
    b = 2 * tm * v * 4                          # x blocks (double-buffered, f32)
    b += 2 * tm * h * 4                         # out blocks (double-buffered, f32)
    b += 2 * (v * h2 + h2 * h) * 2              # W1 / W2 (bf16, double-buffered)
    b += 2 * (2 * v + h2 + h) * 4               # gamma / beta / b1 / b2 (f32)
    b += tm * (v * 4 + v * 2 + h2 * 4 + h2 * 2 + h * 4)   # live intermediates
    return b


def _vmem_ktiled(tm, v, tk, h):
    """Working-set estimate (bytes) for the 2H-tiled (accumulating) kernel."""
    b = 2 * tm * v * 4                          # x blocks
    b += 2 * tm * h * 4                         # out blocks
    b += 2 * ((v * tk + tk * h) * 2 + tk * 4)   # W1 / W2 / b1 tiles (double-buf)
    b += 2 * (2 * v + h) * 4                    # gamma / beta / b2
    b += tm * v * 2 + tm * h * 4                # scratch: xn (bf16) + acc (f32)
    b += tm * (tk * 4 + tk * 2 + h * 4)         # live intermediates
    return b


# ------------------------------ kernel bodies ------------------------------

def _layernorm(x, gamma, beta):
    """LayerNorm over the last dim with one-pass moments (f32 math)."""
    inv_n = 1.0 / float(x.shape[-1])
    s1 = jnp.sum(x, axis=-1, keepdims=True)
    s2 = jnp.sum(x * x, axis=-1, keepdims=True)
    mean = s1 * inv_n
    var = jnp.maximum(s2 * inv_n - mean * mean, 0.0)
    xn = (x - mean) * jax.lax.rsqrt(var + LN_EPS)
    return xn * gamma + beta


def _gelu_to_bf16(h, use_bf16):
    """tanh-approximation GELU; returns bf16 (feeds the second MXU matmul).

    TODO(synk): if ACT2FN[args.hidden_act] is the exact erf-based GELU (or a
    different activation), swap this formula accordingly.
    """
    c = 0.7978845608028654  # sqrt(2/pi)
    if use_bf16:
        h = h.astype(jnp.bfloat16)  # bf16 VPU/EUP path (v6e / v7x only)
    g = 0.5 * h * (1.0 + jnp.tanh(c * (h + 0.044715 * h * h * h)))
    return g.astype(jnp.bfloat16)


def _project_kernel(x_ref, gam_ref, bet_ref, w1_ref, b1_ref, w2_ref, b2_ref,
                    o_ref, *, use_bf16_gelu):
    """Fused LayerNorm -> Dense1 -> GELU -> Dense2 for one row tile."""
    x = x_ref[...].astype(jnp.float32)
    h = _layernorm(x, gam_ref[...], bet_ref[...])
    h1 = jnp.dot(h.astype(jnp.bfloat16), w1_ref[...],
                 preferred_element_type=jnp.float32) + b1_ref[...]
    g = _gelu_to_bf16(h1, use_bf16_gelu)
    h2 = jnp.dot(g, w2_ref[...], preferred_element_type=jnp.float32) + b2_ref[...]
    o_ref[...] = h2.astype(o_ref.dtype)


def _project_kernel_ktiled(x_ref, gam_ref, bet_ref, w1_ref, b1_ref, w2_ref,
                           b2_ref, o_ref, xn_ref, acc_ref, *, use_bf16_gelu):
    """Same fusion, but the 2H dim is tiled (grid axis 1, 'arbitrary').

    LayerNorm is computed once per row tile (k == 0) and cached in bf16;
    Dense2 accumulates in an f32 VMEM scratch and stores on the last k.
    """
    k = pl.program_id(1)

    @pl.when(k == 0)
    def _():
        x = x_ref[...].astype(jnp.float32)
        xn_ref[...] = _layernorm(x, gam_ref[...], bet_ref[...]).astype(jnp.bfloat16)
        acc_ref[...] = jnp.zeros_like(acc_ref)

    h1 = jnp.dot(xn_ref[...], w1_ref[...],
                 preferred_element_type=jnp.float32) + b1_ref[...]
    g = _gelu_to_bf16(h1, use_bf16_gelu)
    acc_ref[...] += jnp.dot(g, w2_ref[...], preferred_element_type=jnp.float32)

    @pl.when(k == pl.num_programs(1) - 1)
    def _():
        o_ref[...] = (acc_ref[...] + b2_ref[...]).astype(o_ref.dtype)


# -------------------------------- wrapper ----------------------------------

def project_forward(x, gamma, beta, w1, b1, w2, b2, *, tm=512, h2_tile=None):
    """x: (B, S, V).  Returns (B, S, H) in x.dtype, H = w2.shape[1]."""
    B, S, V = x.shape
    H2 = w1.shape[1]
    H = w2.shape[1]
    M = B * S

    kind, vmem_cap = _tpu_info()
    budget = (vmem_cap * 5) // 8                 # ~80 MiB v5e/v6e, ~40 MiB v7x
    vmem_cap_limit = (vmem_cap * 3) // 4
    use_bf16_gelu = ("v6" in kind) or ("v7" in kind)   # v5e has no bf16 VPU/EUP

    # No padded copies of x / y: blocks use the true feature widths.
    x2d = x.reshape(M, V)
    g2d = gamma.reshape(1, V).astype(jnp.float32)
    bt2d = beta.reshape(1, V).astype(jnp.float32)
    w1b = w1.astype(jnp.bfloat16)
    b1r = b1.reshape(1, H2).astype(jnp.float32)
    w2b = w2.astype(jnp.bfloat16)
    b2r = b2.reshape(1, H).astype(jnp.float32)

    # ---- row-tile selection ----
    # Small problems: a single grid step (no pointless 2-step split); on v7x
    # only for really small M so both TensorCores stay usable otherwise.
    small = M <= (128 if "v7" in kind else tm)
    if small:
        tm_base = max(8, _round_up(M, 8))
    else:
        min_steps = 4 if "v7" in kind else 2     # >= 2 steps per TC on v7x
        tm_base = min(tm, max(8, _round_up(pl.cdiv(M, min_steps), 8)))

    use_ktiled = h2_tile is not None
    tm_eff = tm_base
    if not use_ktiled:
        while _vmem_simple(tm_eff, V, H2, H) > budget and tm_eff > 64:
            tm_eff = max(64, _round_up(tm_eff // 2, 8))
        if _vmem_simple(tm_eff, V, H2, H) > budget:
            # Weights don't fit even at tm=64: tile the 2H (contraction) dim
            # instead of shrinking the row tile further.
            use_ktiled = True
            tm_eff = tm_base

    cost = pl.CostEstimate(
        flops=2 * M * V * H2 + 2 * M * H2 * H,
        transcendentals=M * H2,
        bytes_accessed=(M * V + M * H) * 4 + (V * H2 + H2 * H) * 2
                       + (2 * V + H2 + H) * 4,
    )

    if not use_ktiled:
        est = _vmem_simple(tm_eff, V, H2, H)
        vmem_limit = int(min(vmem_cap_limit, max(32 << 20, 2 * est)))
        grid = (pl.cdiv(M, tm_eff),)

        kernel = functools.partial(_project_kernel, use_bf16_gelu=use_bf16_gelu)
        out2d = pl.pallas_call(
            kernel,
            out_shape=jax.ShapeDtypeStruct((M, H), x.dtype),
            grid_spec=pltpu.PrefetchScalarGridSpec(
                num_scalar_prefetch=0,
                grid=grid,
                in_specs=[
                    pl.BlockSpec((tm_eff, V), lambda i: (i, 0)),   # x rows
                    pl.BlockSpec((1, V), lambda i: (0, 0)),        # LN gamma
                    pl.BlockSpec((1, V), lambda i: (0, 0)),        # LN beta
                    pl.BlockSpec((V, H2), lambda i: (0, 0)),       # W1 (bf16)
                    pl.BlockSpec((1, H2), lambda i: (0, 0)),       # b1
                    pl.BlockSpec((H2, H), lambda i: (0, 0)),       # W2 (bf16)
                    pl.BlockSpec((1, H), lambda i: (0, 0)),        # b2
                ],
                out_specs=pl.BlockSpec((tm_eff, H), lambda i: (i, 0)),
            ),
            compiler_params=pltpu.CompilerParams(
                dimension_semantics=("parallel",),
                vmem_limit_bytes=vmem_limit,
            ),
            cost_estimate=cost,
        )(x2d, g2d, bt2d, w1b, b1r, w2b, b2r)
    else:
        # ---- 2H-tiled path (large weights, or forced via h2_tile) ----
        h2_ceil = _round_up(H2, 128)
        if h2_tile is not None:
            tk = min(max(128, _round_up(h2_tile, 128)), h2_ceil)
        else:
            tk = min(512, h2_ceil)
        while _vmem_ktiled(tm_eff, V, tk, H) > budget and (tk > 128 or tm_eff > 64):
            if tk > 128:
                tk = max(128, tk // 2)
            else:
                tm_eff = max(64, _round_up(tm_eff // 2, 8))

        H2p = _round_up(H2, tk)
        if H2p != H2:
            # Zero-pad only the 2H (contraction) dim of the weights; padded
            # columns/rows contribute exactly 0 to the Dense2 accumulation.
            w1b = jnp.zeros((V, H2p), jnp.bfloat16).at[:, :H2].set(w1b)
            b1r = jnp.zeros((1, H2p), jnp.float32).at[:, :H2].set(b1r)
            w2b = jnp.zeros((H2p, H), jnp.bfloat16).at[:H2, :].set(w2b)

        est = _vmem_ktiled(tm_eff, V, tk, H)
        vmem_limit = int(min(vmem_cap_limit, max(32 << 20, 2 * est)))
        grid = (pl.cdiv(M, tm_eff), H2p // tk)

        kernel = functools.partial(_project_kernel_ktiled,
                                   use_bf16_gelu=use_bf16_gelu)
        out2d = pl.pallas_call(
            kernel,
            out_shape=jax.ShapeDtypeStruct((M, H), x.dtype),
            grid_spec=pltpu.PrefetchScalarGridSpec(
                num_scalar_prefetch=0,
                grid=grid,
                in_specs=[
                    pl.BlockSpec((tm_eff, V), lambda i, k: (i, 0)),  # x rows
                    pl.BlockSpec((1, V), lambda i, k: (0, 0)),       # LN gamma
                    pl.BlockSpec((1, V), lambda i, k: (0, 0)),       # LN beta
                    pl.BlockSpec((V, tk), lambda i, k: (0, k)),      # W1 tile
                    pl.BlockSpec((1, tk), lambda i, k: (0, k)),      # b1 tile
                    pl.BlockSpec((tk, H), lambda i, k: (k, 0)),      # W2 tile
                    pl.BlockSpec((1, H), lambda i, k: (0, 0)),       # b2
                ],
                out_specs=pl.BlockSpec((tm_eff, H), lambda i, k: (i, 0)),
                scratch_shapes=[
                    pltpu.VMEM((tm_eff, V), jnp.bfloat16),   # cached LN(x)
                    pltpu.VMEM((tm_eff, H), jnp.float32),    # Dense2 accumulator
                ],
            ),
            compiler_params=pltpu.CompilerParams(
                dimension_semantics=("parallel", "arbitrary"),
                vmem_limit_bytes=vmem_limit,
            ),
            cost_estimate=cost,
        )(x2d, g2d, bt2d, w1b, b1r, w2b, b2r)

    return out2d.reshape(B, S, H)


# --------------------------------- main -------------------------------------

if __name__ == "__main__":
    def ref_forward(x, gamma, beta, w1, b1, w2, b2):
        mean = jnp.mean(x, axis=-1, keepdims=True)
        var = jnp.mean((x - mean) ** 2, axis=-1, keepdims=True)
        h = (x - mean) / jnp.sqrt(var + LN_EPS) * gamma + beta
        h = h @ w1 + b1
        h = jax.nn.gelu(h, approximate=True)
        return h @ w2 + b2

    def make_params(key, V, H):
        kw1, kb1, kw2, kb2 = jax.random.split(key, 4)
        gamma = jnp.ones((V,), jnp.float32)
        beta = jnp.zeros((V,), jnp.float32)
        w1 = jax.random.normal(kw1, (V, 2 * H), jnp.float32) * 0.02
        b1 = jax.random.normal(kb1, (2 * H,), jnp.float32) * 0.02
        w2 = jax.random.normal(kw2, (2 * H, H), jnp.float32) * 0.02
        b2 = jax.random.normal(kb2, (H,), jnp.float32) * 0.02
        return gamma, beta, w1, b1, w2, b2

    key = jax.random.PRNGKey(0)

    # --- default module shapes: args.visual_size=32, args.hidden_size=32 ---
    B, S, VISUAL, HIDDEN = 2, 8, 32, 32
    k0, k1 = jax.random.split(key)
    x = jax.random.normal(k0, (B, S, VISUAL), dtype=jnp.float32)
    params = make_params(k1, VISUAL, HIDDEN)

    out = project_forward(x, *params)
    jax.block_until_ready(out)
    r = ref_forward(x, *params)
    assert out.shape == (B, S, HIDDEN)
    err = float(jnp.max(jnp.abs(out - r)))
    assert err < 1e-2, err

    # --- also exercise the 2H-tiled (large-weight) accumulator path --------
    B2, S2, V2, H2d = 2, 8, 128, 128
    k2, k3 = jax.random.split(k1)
    x2 = jax.random.normal(k2, (B2, S2, V2), dtype=jnp.float32)
    params2 = make_params(k3, V2, H2d)

    out2 = project_forward(x2, *params2, h2_tile=128)   # forces the k-tiled grid
    jax.block_until_ready(out2)
    r2 = ref_forward(x2, *params2)
    assert out2.shape == (B2, S2, H2d)
    err2 = float(jnp.max(jnp.abs(out2 - r2)))
    assert err2 < 2e-2, err2

    print("KERNEL_OK")
</pallas_src>

<mosaic_0001>
module attributes {stable_mosaic.version = 11 : i64} {
  func.func @_project_kernel(%arg0: i32, %arg1: memref<16x32xf32, #tpu.memory_space<vmem>>, %arg2: memref<1x32xf32, #tpu.memory_space<vmem>>, %arg3: memref<1x32xf32, #tpu.memory_space<vmem>>, %arg4: memref<32x64xbf16, #tpu.memory_space<vmem>>, %arg5: memref<1x64xf32, #tpu.memory_space<vmem>>, %arg6: memref<64x32xbf16, #tpu.memory_space<vmem>>, %arg7: memref<1x32xf32, #tpu.memory_space<vmem>>, %arg8: memref<16x32xf32, #tpu.memory_space<vmem>>) attributes {dimension_semantics = [#tpu.dimension_semantics<parallel>], iteration_bounds = array<i64: 1>, scalar_prefetch = 0 : i64, scratch_operands = 0 : i64, tpu.core_type = #tpu.core_type<tc>, window_params = [{transform_indices = @transform_0, window_bounds = array<i64: 16, 32>}, {pipeline_mode = #tpu.pipeline_mode<synchronous>, transform_indices = @transform_1, window_bounds = array<i64: 1, 32>}, {pipeline_mode = #tpu.pipeline_mode<synchronous>, transform_indices = @transform_2, window_bounds = array<i64: 1, 32>}, {pipeline_mode = #tpu.pipeline_mode<synchronous>, transform_indices = @transform_3, window_bounds = array<i64: 32, 64>}, {pipeline_mode = #tpu.pipeline_mode<synchronous>, transform_indices = @transform_4, window_bounds = array<i64: 1, 64>}, {pipeline_mode = #tpu.pipeline_mode<synchronous>, transform_indices = @transform_5, window_bounds = array<i64: 64, 32>}, {pipeline_mode = #tpu.pipeline_mode<synchronous>, transform_indices = @transform_6, window_bounds = array<i64: 1, 32>}, {transform_indices = @transform_7, window_bounds = array<i64: 16, 32>}]} {
    %c0 = arith.constant 0 : index
    %c0_0 = arith.constant 0 : index
    %0 = vector.load %arg1[%c0, %c0_0] : memref<16x32xf32, #tpu.memory_space<vmem>>, vector<16x32xf32>
    %c0_1 = arith.constant 0 : index
    %c0_2 = arith.constant 0 : index
    %1 = vector.load %arg2[%c0_1, %c0_2] : memref<1x32xf32, #tpu.memory_space<vmem>>, vector<1x32xf32>
    %c0_3 = arith.constant 0 : index
    %c0_4 = arith.constant 0 : index
    %2 = vector.load %arg3[%c0_3, %c0_4] : memref<1x32xf32, #tpu.memory_space<vmem>>, vector<1x32xf32>
    %cst = arith.constant dense<0.000000e+00> : vector<16xf32>
    %3 = vector.multi_reduction <add>, %0, %cst [1] : vector<16x32xf32> to vector<16xf32>
    %4 = vector.shape_cast %3 : vector<16xf32> to vector<16x1xf32>
    %5 = arith.mulf %0, %0 : vector<16x32xf32>
    %cst_5 = arith.constant dense<0.000000e+00> : vector<16xf32>
    %6 = vector.multi_reduction <add>, %5, %cst_5 [1] : vector<16x32xf32> to vector<16xf32>
    %7 = vector.shape_cast %6 : vector<16xf32> to vector<16x1xf32>
    %cst_6 = arith.constant 3.125000e-02 : f32
    %8 = vector.broadcast %cst_6 : f32 to vector<16x1xf32>
    %9 = arith.mulf %4, %8 : vector<16x1xf32>
    %cst_7 = arith.constant 3.125000e-02 : f32
    %10 = vector.broadcast %cst_7 : f32 to vector<16x1xf32>
    %11 = arith.mulf %7, %10 : vector<16x1xf32>
    %12 = arith.mulf %9, %9 : vector<16x1xf32>
    %13 = arith.subf %11, %12 : vector<16x1xf32>
    %cst_8 = arith.constant 0.000000e+00 : f32
    %14 = vector.broadcast %cst_8 : f32 to vector<16x1xf32>
    %15 = arith.maximumf %13, %14 : vector<16x1xf32>
    %16 = vector.broadcast %9 : vector<16x1xf32> to vector<16x32xf32>
    %17 = arith.subf %0, %16 : vector<16x32xf32>
    %cst_9 = arith.constant 9.99999996E-13 : f32
    %18 = vector.broadcast %cst_9 : f32 to vector<16x1xf32>
    %19 = arith.addf %15, %18 : vector<16x1xf32>
    %20 = math.rsqrt %19 : vector<16x1xf32>
    %21 = vector.broadcast %20 : vector<16x1xf32> to vector<16x32xf32>
    %22 = arith.mulf %17, %21 : vector<16x32xf32>
    %23 = vector.broadcast %1 : vector<1x32xf32> to vector<16x32xf32>
    %24 = arith.mulf %22, %23 : vector<16x32xf32>
    %25 = vector.broadcast %2 : vector<1x32xf32> to vector<16x32xf32>
    %26 = arith.addf %24, %25 : vector<16x32xf32>
    %27 = arith.truncf %26 : vector<16x32xf32> to vector<16x32xbf16>
    %c0_10 = arith.constant 0 : index
    %c0_11 = arith.constant 0 : index
    %28 = vector.load %arg4[%c0_10, %c0_11] : memref<32x64xbf16, #tpu.memory_space<vmem>>, vector<32x64xbf16>
    %cst_12 = arith.constant dense<0.000000e+00> : vector<16x64xf32>
    %29 = tpu.matmul %27, %28, %cst_12 {dimension_numbers = #tpu.dot_dimension_numbers<[1], [0], [0], [1], [0, 0, 1, 1], [], []>} : vector<16x32xbf16>, vector<32x64xbf16>, vector<16x64xf32> -> vector<16x64xf32>
    %c0_13 = arith.constant 0 : index
    %c0_14 = arith.constant 0 : index
    %30 = vector.load %arg5[%c0_13, %c0_14] : memref<1x64xf32, #tpu.memory_space<vmem>>, vector<1x64xf32>
    %31 = vector.broadcast %30 : vector<1x64xf32> to vector<16x64xf32>
    %32 = arith.addf %29, %31 : vector<16x64xf32>
    %cst_15 = arith.constant 5.000000e-01 : f32
    %33 = vector.broadcast %cst_15 : f32 to vector<16x64xf32>
    %34 = arith.mulf %33, %32 : vector<16x64xf32>
    %cst_16 = arith.constant 4.471500e-02 : f32
    %35 = vector.broadcast %cst_16 : f32 to vector<16x64xf32>
    %36 = arith.mulf %35, %32 : vector<16x64xf32>
    %37 = arith.mulf %36, %32 : vector<16x64xf32>
    %38 = arith.mulf %37, %32 : vector<16x64xf32>
    %39 = arith.addf %32, %38 : vector<16x64xf32>
    %cst_17 = arith.constant 0.797884583 : f32
    %40 = vector.broadcast %cst_17 : f32 to vector<16x64xf32>
    %41 = arith.mulf %40, %39 : vector<16x64xf32>
    %42 = math.tanh %41 : vector<16x64xf32>
    %cst_18 = arith.constant 1.000000e+00 : f32
    %43 = vector.broadcast %cst_18 : f32 to vector<16x64xf32>
    %44 = arith.addf %43, %42 : vector<16x64xf32>
    %45 = arith.mulf %34, %44 : vector<16x64xf32>
    %46 = arith.truncf %45 : vector<16x64xf32> to vector<16x64xbf16>
    %c0_19 = arith.constant 0 : index
    %c0_20 = arith.constant 0 : index
    %47 = vector.load %arg6[%c0_19, %c0_20] : memref<64x32xbf16, #tpu.memory_space<vmem>>, vector<64x32xbf16>
    %cst_21 = arith.constant dense<0.000000e+00> : vector<16x32xf32>
    %48 = tpu.matmul %46, %47, %cst_21 {dimension_numbers = #tpu.dot_dimension_numbers<[1], [0], [0], [1], [0, 0, 1, 1], [], []>} : vector<16x64xbf16>, vector<64x32xbf16>, vector<16x32xf32> -> vector<16x32xf32>
    %c0_22 = arith.constant 0 : index
    %c0_23 = arith.constant 0 : index
    %49 = vector.load %arg7[%c0_22, %c0_23] : memref<1x32xf32, #tpu.memory_space<vmem>>, vector<1x32xf32>
    %50 = vector.broadcast %49 : vector<1x32xf32> to vector<16x32xf32>
    %51 = arith.addf %48, %50 : vector<16x32xf32>
    %c0_24 = arith.constant 0 : index
    %c0_25 = arith.constant 0 : index
    %52 = vector.load %arg8[%c0_24, %c0_25] : memref<16x32xf32, #tpu.memory_space<vmem>>, vector<16x32xf32>
    tpu.vector_store %arg8[%c0_24, %c0_25], %51 {strides = array<i32>} : memref<16x32xf32, #tpu.memory_space<vmem>>, vector<16x32xf32>,
    return
  }
  func.func @transform_0(%arg0: i32) -> (i32, i32) {
    %c0_i32 = arith.constant 0 : i32
    %c0_i32_0 = arith.constant 0 : i32
    return %arg0, %c0_i32 : i32, i32
  }
  func.func @transform_1(%arg0: i32) -> (i32, i32) {
    %c0_i32 = arith.constant 0 : i32
    %c0_i32_0 = arith.constant 0 : i32
    %c0_i32_1 = arith.constant 0 : i32
    return %c0_i32, %c0_i32_0 : i32, i32
  }
  func.func @transform_2(%arg0: i32) -> (i32, i32) {
    %c0_i32 = arith.constant 0 : i32
    %c0_i32_0 = arith.constant 0 : i32
    %c0_i32_1 = arith.constant 0 : i32
    return %c0_i32, %c0_i32_0 : i32, i32
  }
  func.func @transform_3(%arg0: i32) -> (i32, i32) {
    %c0_i32 = arith.constant 0 : i32
    %c0_i32_0 = arith.constant 0 : i32
    %c0_i32_1 = arith.constant 0 : i32
    return %c0_i32, %c0_i32_0 : i32, i32
  }
  func.func @transform_4(%arg0: i32) -> (i32, i32) {
    %c0_i32 = arith.constant 0 : i32
    %c0_i32_0 = arith.constant 0 : i32
    %c0_i32_1 = arith.constant 0 : i32
    return %c0_i32, %c0_i32_0 : i32, i32
  }
  func.func @transform_5(%arg0: i32) -> (i32, i32) {
    %c0_i32 = arith.constant 0 : i32
    %c0_i32_0 = arith.constant 0 : i32
    %c0_i32_1 = arith.constant 0 : i32
    return %c0_i32, %c0_i32_0 : i32, i32
  }
  func.func @transform_6(%arg0: i32) -> (i32, i32) {
    %c0_i32 = arith.constant 0 : i32
    %c0_i32_0 = arith.constant 0 : i32
    %c0_i32_1 = arith.constant 0 : i32
    return %c0_i32, %c0_i32_0 : i32, i32
  }
  func.func @transform_7(%arg0: i32) -> (i32, i32) {
    %c0_i32 = arith.constant 0 : i32
    %c0_i32_0 = arith.constant 0 : i32
    return %arg0, %c0_i32 : i32, i32
  }
}

</mosaic_0001>

<llo_original>
// kernel: tpu_custom_call.1
$region0: #{tpu_custom_call.1}
  #allocation0 [shape = 'u32[]', space=smem, size = 0x4, offset = 0x4, fixed_abs, tag = 'smem constant byte address 0x4 - core index']
  #allocation1 [shape = 'u32[144,128]{1,0:T(1,128)}', space=vmem, size = 0x12000, scoped, tag = 'internal scratch']
  %s0 = inlined_call_operand.vmem [shape: f32[16,32], index: 0, kind: input, shape index: {}]
  %s1 = inlined_call_operand.vmem [shape: f32[1,32], index: 1, kind: input, shape index: {}]
  %s2 = inlined_call_operand.vmem [shape: f32[1,32], index: 2, kind: input, shape index: {}]
  %s3 = inlined_call_operand.vmem [shape: bf16[32,64], index: 3, kind: input, shape index: {}]
  %s4 = inlined_call_operand.vmem [shape: f32[1,64], index: 4, kind: input, shape index: {}]
  %s5 = inlined_call_operand.vmem [shape: bf16[64,32], index: 5, kind: input, shape index: {}]
  %s6 = inlined_call_operand.vmem [shape: f32[1,32], index: 6, kind: input, shape index: {}]
  %s7 = inlined_call_operand.hbm [shape: f32[16,32], index: 7, kind: output, shape index: {}]
  %s8 = sld [smem:[#allocation0]]
  $region38: #{tpu_custom_call.1} parent=0
    _
  %s10 = ssub.s32 1, %s8
  %s11 = scalar_select 0, %s10, %s8
  $region1: #{tpu_custom_call.1} parent=0
    #allocation2 [shape = 'u8[8192]{0}', space=vmem, size = 0x2000, scoped, tag = 'output window, operand 0, single buffered']
    #allocation3 [shape = 's32[1]{0}', space=sflag, size = 0x4, scoped, tag = 'scoped memory for tpu_custom_call.1']
    %12 = vsyncpa [#allocation3], 0
    // Predicated region
    $region2: #{tpu_custom_call.1} parent=1 // pred_check
      _
    $region3: #{tpu_custom_call.1} parent=1 // pred_check_branch
      %14 = sbr.rel (0) target = $region5
    $region4: #{tpu_custom_call.1} parent=1 // pred_region
      _
    $region5: #{tpu_custom_call.1} parent=1 // pred_fallthru
      _
    // Predicated region
    $region6: #{tpu_custom_call.1} parent=1 // pred_check
      _
    $region7: #{tpu_custom_call.1} parent=1 // pred_check_branch
      %16 = sbr.rel (0) target = $region9
    $region8: #{tpu_custom_call.1} parent=1 // pred_region
      _
    $region9: #{tpu_custom_call.1} parent=1 // pred_fallthru
      _
    // Predicated region
    $region10: #{tpu_custom_call.1} parent=1 // pred_check
      _
    $region11: #{tpu_custom_call.1} parent=1 // pred_check_branch
      %18 = sbr.rel (0) target = $region13
    $region12: #{tpu_custom_call.1} parent=1 // pred_region
      _
    $region13: #{tpu_custom_call.1} parent=1 // pred_fallthru
      _
    // Predicated region
    $region14: #{tpu_custom_call.1} parent=1 // pred_check
      _
    $region15: #{tpu_custom_call.1} parent=1 // pred_check_branch
      %20 = sbr.rel (0) target = $region17
    $region16: #{tpu_custom_call.1} parent=1 // pred_region
      _
    $region17: #{tpu_custom_call.1} parent=1 // pred_fallthru
      _
    // Predicated region
    $region18: #{tpu_custom_call.1} parent=1 // pred_check
      _
    $region19: #{tpu_custom_call.1} parent=1 // pred_check_branch
      %22 = sbr.rel (0) target = $region21
    $region20: #{tpu_custom_call.1} parent=1 // pred_region
      _
    $region21: #{tpu_custom_call.1} parent=1 // pred_fallthru
      _
    // Predicated region
    $region22: #{tpu_custom_call.1} parent=1 // pred_check
      _
    $region23: #{tpu_custom_call.1} parent=1 // pred_check_branch
      %24 = sbr.rel (0) target = $region25
    $region24: #{tpu_custom_call.1} parent=1 // pred_region
      _
    $region25: #{tpu_custom_call.1} parent=1 // pred_fallthru
      _
    // Predicated region
    $region26: #{tpu_custom_call.1} parent=1 // pred_check
      _
    $region27: #{tpu_custom_call.1} parent=1 // pred_check_branch
      %26 = sbr.rel (0) target = $region29
    $region28: #{tpu_custom_call.1} parent=1 // pred_region
      _
    $region29: #{tpu_custom_call.1} parent=1 // pred_fallthru
      _
    %v28 = vld [vmem:[%s0] sm:$0xff]
    %v29 = vld [vmem:[%s0 + $0x8] sm:$0xff]
    %v30 = vld [vmem:[%s1] sm:$0x1]
    %v31 = vld [vmem:[%s2] sm:$0x1]
    %vm32 = vcmask 261120
    %v33 = vsel %vm32, %v28, 0.0
    %34 = vadd.xlane.f32.xlu0 %v33
    %v35 = vpop.xlane.xlu0 %34
    %v36 = vsel %vm32, %v29, 0.0
    %37 = vadd.xlane.f32.xlu0 %v36
    %v38 = vpop.xlane.xlu0 %37
    %v39 = vmul.f32 %v28, %v28
    %v40 = vmul.f32 %v29, %v29
    %v41 = vsel %vm32, %v39, 0.0
    %42 = vadd.xlane.f32.xlu0 %v41
    %v43 = vpop.xlane.xlu0 %42
    %v44 = vsel %vm32, %v40, 0.0
    %45 = vadd.xlane.f32.xlu0 %v44
    %v46 = vpop.xlane.xlu0 %45
    %v47 = vmul.f32 %v35, 0.03125
    %v48 = vmul.f32 %v38, 0.03125
    %v49 = vmul.f32 %v43, 0.03125
    %v50 = vmul.f32 %v46, 0.03125
    %v51 = vmul.f32 %v47, %v47
    %v52 = vmul.f32 %v48, %v48
    %v53 = vsub.f32 %v49, %v51
    %v54 = vsub.f32 %v50, %v52
    %v55 = vmax.f32 %v53, 0.0
    %v56 = vmax.f32 %v54, 0.0
    %v57 = vsub.f32 %v28, %v47
    %v58 = vsub.f32 %v29, %v48
    %v59 = vadd.f32 %v55, 1e-12
    %v60 = vadd.f32 %v56, 1e-12
    %v61 = vrsqrt.pop %v59
    %v62 = vrsqrt.pop %v60
    %v63 = vmul.f32 %v57, %v61
    %v64 = vmul.f32 %v58, %v62
    %v66 = vlaneseq
    %v67 = vshrl.u32 %v66, 7
    %v68 = vsub.s32 0, %v67
    %v69 = vrot.slane %v30, %v68
    %v71 = vmul.f32 %v63, %v69
    %v72 = vmul.f32 %v64, %v69
    %v74 = vlaneseq
    %v75 = vshrl.u32 %v74, 7
    %v76 = vsub.s32 0, %v75
    %v77 = vrot.slane %v31, %v76
    %v79 = vadd.f32 %v71, %v77
    %v80 = vadd.f32 %v72, %v77
    %v81 = vpack.c.bf16 %v80, %v79
    %v82 = vld [vmem:[%s3] sm:$0xf]
    %v83 = vld [vmem:[%s3 + $0x4] sm:$0xf]
    %v84 = vld [vmem:[%s3 + $0x8] sm:$0xf]
    %v85 = vld [vmem:[%s3 + $0xc] sm:$0xf]
    %v86 = vld [vmem:[%s4] sm:$0x1]
    %v88 = vlaneseq
    %v89 = vshrl.u32 %v88, 7
    %v90 = vsub.s32 0, %v89
    %v91 = vrot.slane %v86, %v90
    %v97 = vunpack.c.l.b16 %v82
    %v98 = vunpack.c.l.b16 %v83
    %v99 = vunpack.c.l.b16 %v84
    %v100 = vunpack.c.l.b16 %v85
    %v101 = vpack.c.b16 %v98, %v97
    %v102 = vpack.c.b16 %v100, %v99
    %v106 = vsel %vm32, %v81, 0
    %108 = vmatprep.subr.bf16.mxu0 0
    %109 = vmatpush1.bf16.msra.mxu0 %v101
    %110 = vmatprep.subr.bf16.mxu0 0
    %111 = vmatpush1.bf16.msra.mxu0 %v102
    %112 = vmatprep.subr.bf16.mxu0 0
    %113 = vmatpush1.bf16.msra.mxu0 0
    %114 = vmatprep.subr.bf16.mxu0 0
    %115 = vmatpush1.bf16.msra.mxu0 0
    %116 = vmatprep.subr.bf16.mxu0 0
    %117 = vmatpush1.bf16.msra.mxu0 0
    %118 = vmatprep.subr.bf16.mxu0 0
    %119 = vmatpush1.bf16.msra.mxu0 0
    %120 = vmatprep.subr.bf16.mxu0 0
    %121 = vmatpush1.bf16.msra.mxu0 0
    %122 = vmatprep.subr.bf16.mxu0 0
    %123 = vmatpush1.bf16.msra.mxu0 0
    %124 = vmatprep.subr.bf16.mxu0 0
    %125 = vmatpush1.bf16.msra.mxu0 0
    %126 = vmatprep.subr.bf16.mxu0 0
    %127 = vmatpush1.bf16.msra.mxu0 0
    %128 = vmatprep.subr.bf16.mxu0 0
    %129 = vmatpush1.bf16.msra.mxu0 0
    %130 = vmatprep.subr.bf16.mxu0 0
    %131 = vmatpush1.bf16.msra.mxu0 0
    %132 = vmatprep.subr.bf16.mxu0 0
    %133 = vmatpush1.bf16.msra.mxu0 0
    %134 = vmatprep.subr.bf16.mxu0 0
    %135 = vmatpush1.bf16.msra.mxu0 0
    %136 = vmatprep.subr.bf16.mxu0 0
    %137 = vmatpush1.bf16.msra.mxu0 0
    %138 = vmatprep.subr.bf16.mxu0 0
    %139 = vmatpush1.bf16.msra.mxu0 0
    %140 = vmatprep.mubr.bf16.mxu0 0
    %141 = vmatmul.mubr.bf16.gmra.mrb[0].mxu0 %v106
    %v142 = vpop.f32.mrb[0].mxu0
    %v143 = vadd.f32 %v91, %v142
    %v144 = vpop.f32.mrb[0].mxu0
    %v145 = vpop.f32.mrb[0].mxu0
    %v146 = vadd.f32 %v91, %v145
    %v147 = vpop.f32.mrb[0].mxu0
    %148 = vdwg.mxu0
    %v149 = vmul.f32 %v143, 0.5
    %v150 = vmul.f32 %v146, 0.5
    %v151 = vmul.f32 %v143, 0.044715
    %v152 = vmul.f32 %v146, 0.044715
    %v153 = vmul.f32 %v151, %v143
    %v154 = vmul.f32 %v152, %v146
    %v155 = vmul.f32 %v153, %v143
    %v156 = vmul.f32 %v154, %v146
    %v157 = vadd.f32 %v143, %v155
    %v158 = vadd.f32 %v146, %v156
    %v159 = vmul.f32 %v157, 0.7978846
    %v160 = vmul.f32 %v158, 0.7978846
    %v161 = vtanh.pop %v159
    %v162 = vtanh.pop %v160
    %v163 = vadd.f32 %v161, 1.0
    %v164 = vadd.f32 %v162, 1.0
    %v165 = vmul.f32 %v149, %v163
    %v166 = vmul.f32 %v150, %v164
    %v167 = vpack.c.bf16 %v166, %v165
    %v168 = vld [vmem:[%s5] sm:$0xf]
    %v169 = vld [vmem:[%s5 + $0x4] sm:$0xf]
    %v170 = vld [vmem:[%s5 + $0x8] sm:$0xf]
    %v171 = vld [vmem:[%s5 + $0xc] sm:$0xf]
    %v172 = vld [vmem:[%s5 + $0x10] sm:$0xf]
    %v173 = vld [vmem:[%s5 + $0x14] sm:$0xf]
    %v174 = vld [vmem:[%s5 + $0x18] sm:$0xf]
    %v175 = vld [vmem:[%s5 + $0x1c] sm:$0xf]
    %v176 = vld [vmem:[%s6] sm:$0x1]
    %v178 = vlaneseq
    %v179 = vshrl.u32 %v178, 7
    %v180 = vsub.s32 0, %v179
    %v181 = vrot.slane %v176, %v180
    %v191 = vunpack.c.l.b16 %v168
    %v192 = vunpack.c.l.b16 %v169
    %v193 = vunpack.c.l.b16 %v170
    %v194 = vunpack.c.l.b16 %v171
    %v195 = vunpack.c.l.b16 %v172
    %v196 = vunpack.c.l.b16 %v173
    %v197 = vunpack.c.l.b16 %v174
    %v198 = vunpack.c.l.b16 %v175
    %v199 = vpack.c.b16 %v192, %v191
    %v200 = vpack.c.b16 %v194, %v193
    %v201 = vpack.c.b16 %v196, %v195
    %v202 = vpack.c.b16 %v198, %v197
    %vm207 = vcmask 523264
    %v209 = vsel %vm207, %v167, 0
    %211 = vmatprep.subr.bf16.mxu0 0
    %212 = vmatpush1.bf16.msra.mxu0 %v199
    %213 = vmatprep.subr.bf16.mxu0 0
    %214 = vmatpush1.bf16.msra.mxu0 %v200
    %215 = vmatprep.subr.bf16.mxu0 0
    %216 = vmatpush1.bf16.msra.mxu0 %v201
    %217 = vmatprep.subr.bf16.mxu0 0
    %218 = vmatpush1.bf16.msra.mxu0 %v202
    %219 = vmatprep.subr.bf16.mxu0 0
    %220 = vmatpush1.bf16.msra.mxu0 0
    %221 = vmatprep.subr.bf16.mxu0 0
    %222 = vmatpush1.bf16.msra.mxu0 0
    %223 = vmatprep.subr.bf16.mxu0 0
    %224 = vmatpush1.bf16.msra.mxu0 0
    %225 = vmatprep.subr.bf16.mxu0 0
    %226 = vmatpush1.bf16.msra.mxu0 0
    %227 = vmatprep.subr.bf16.mxu0 0
    %228 = vmatpush1.bf16.msra.mxu0 0
    %229 = vmatprep.subr.bf16.mxu0 0
    %230 = vmatpush1.bf16.msra.mxu0 0
    %231 = vmatprep.subr.bf16.mxu0 0
    %232 = vmatpush1.bf16.msra.mxu0 0
    %233 = vmatprep.subr.bf16.mxu0 0
    %234 = vmatpush1.bf16.msra.mxu0 0
    %235 = vmatprep.subr.bf16.mxu0 0
    %236 = vmatpush1.bf16.msra.mxu0 0
    %237 = vmatprep.subr.bf16.mxu0 0
    %238 = vmatpush1.bf16.msra.mxu0 0
    %239 = vmatprep.subr.bf16.mxu0 0
    %240 = vmatpush1.bf16.msra.mxu0 0
    %241 = vmatprep.subr.bf16.mxu0 0
    %242 = vmatpush1.bf16.msra.mxu0 0
    %243 = vmatprep.mubr.bf16.mxu0 0
    %244 = vmatmul.mubr.bf16.gmra.mrb[0].mxu0 %v209
    %v245 = vpop.f32.mrb[0].mxu0
    %v246 = vadd.f32 %v181, %v245
    %v247 = vpop.f32.mrb[0].mxu0
    %v248 = vpop.f32.mrb[0].mxu0
    %v249 = vadd.f32 %v181, %v248
    %v250 = vpop.f32.mrb[0].mxu0
    %251 = vdwg.mxu0
    %252 = vst.msk [vmem:[#allocation2] sm:$0xff] %vm32, %v246
    %253 = vst.msk [vmem:[#allocation2 + $0x8] sm:$0xff] %vm32, %v249
    // Predicated region
    $region30: #{tpu_custom_call.1} parent=1 // pred_check
      _
    $region31: #{tpu_custom_call.1} parent=1 // pred_check_branch
      %255 = sbr.rel (0) target = $region33
    $region32: #{tpu_custom_call.1} parent=1 // pred_region
      %s257 = ssub.s32 256, 256
      %258 = vsyncadd [#allocation3], %s257
      %s259 = sshll.u32 [#allocation2], 4
      %s260 = int_to_ptr.vmem [resolvable:$true] %s259
      %265 = dma.vmem_to_hbm [thread:$0]  %s260, 256, %s7, [#allocation3], 128, 128, 8
    $region33: #{tpu_custom_call.1} parent=1 // pred_fallthru
      _
    // Predicated region
    $region34: #{tpu_custom_call.1} parent=1 // pred_check
      _
    $region35: #{tpu_custom_call.1} parent=1 // pred_check_branch
      %267 = sbr.rel (0) target = $region37
    $region36: #{tpu_custom_call.1} parent=1 // pred_region
      %268 = dma.done [#allocation3], 256
    $region37: #{tpu_custom_call.1} parent=1 // pred_fallthru
      _
    %269 = vsyncpa [#allocation3], 1

</llo_original>
